<compile_context>
chip_gen: v5e
topology: v5e:2x2
jax: 0.10.0
libtpu: 0.0.40
codegen_flags: <defaults>
</compile_context>

<pallas_src>
import functools

import jax
import jax.numpy as jnp
from jax.experimental import pallas as pl
from jax.experimental.pallas import tpu as pltpu


def _layernorm_kernel(x_ref, w_ref, b_ref, o_ref, *, eps: float, h: int, g: int):
    # x_ref: (TR, g*h) tile of rows; w_ref/b_ref: (1, g*h).
    # g == 1: plain LayerNorm over the last axis.
    # g  > 1: the last axis holds g independent length-h segments (lane-dense
    #         packing for small h); per-segment mean / E[x^2] are computed with a
    #         block-diagonal averaging matmul on the (otherwise idle) MXU so no
    #         cross-lane reshapes are needed.
    x = x_ref[...].astype(jnp.float32)
    inv_h = 1.0 / float(h)

    if g == 1:
        s1 = jnp.sum(x, axis=-1, keepdims=True)
        s2 = jnp.sum(x * x, axis=-1, keepdims=True)
        mean = s1 * inv_h
        var = s2 * inv_h - mean * mean
    else:
        gh = g * h
        ri = jax.lax.broadcasted_iota(jnp.int32, (gh, gh), 0) // h
        ci = jax.lax.broadcasted_iota(jnp.int32, (gh, gh), 1) // h
        seg_avg = jnp.where(ri == ci, inv_h, 0.0).astype(jnp.float32)      # (gh, gh)
        mean = jnp.dot(x, seg_avg, preferred_element_type=jnp.float32)     # (TR, gh)
        ex2 = jnp.dot(x * x, seg_avg, preferred_element_type=jnp.float32)  # (TR, gh)
        var = ex2 - mean * mean

    var = jnp.maximum(var, 0.0)          # guard tiny negatives from cancellation
    inv = jax.lax.rsqrt(var + eps)

    w = w_ref[...].astype(jnp.float32)
    b = b_ref[...].astype(jnp.float32)
    o_ref[...] = ((x - mean) * inv * w + b).astype(o_ref.dtype)


def _round_up(v: int, m: int) -> int:
    return ((v + m - 1) // m) * m


def _tile_plan(R: int, H: int, in_bytes: int, out_bytes: int) -> tuple[int, int]:
    """Byte-based row-tile sizing with per-generation VMEM budgets."""
    try:
        cap = int(pltpu.get_tpu_info().vmem_capacity_bytes)
    except Exception:
        cap = 64 << 20                                    # conservative (v7x-sized)

    if cap <= (64 << 20):                                 # v7x: 64 MiB per TensorCore
        vmem_limit = min(52 << 20, max(16 << 20, cap - (8 << 20)))
    else:                                                 # v5e / v6e: 128 MiB
        vmem_limit = min(104 << 20, cap - (16 << 20))
    io_budget = (vmem_limit * 4) // 5                     # slack for temp-estimate error

    sublane = max(8, 32 // max(in_bytes, 1))              # 8 f32 / 16 bf16 / 32 int8,fp8
    io_per_row = H * (in_bytes + out_bytes)               # one input + one output row
    per_row = 2 * io_per_row + 12 * H                     # double-buffered io + ~3 f32 temps

    rows_vmem = max(sublane, io_budget // per_row)        # hard VMEM cap (rows)
    rows_min = pl.cdiv(4 << 20, io_per_row)               # >= ~4 MiB in+out per step
    rows_4st = pl.cdiv(R, 4)                              # >= 4 steps when tiles stay big

    if R <= sublane:
        tile = R                                          # block == full dim (always legal)
    else:
        tile = max(rows_min, min(rows_vmem, rows_4st))
        tile = min(tile, rows_vmem, (R // sublane) * sublane)
        tile = max(sublane, (tile // sublane) * sublane)

    # Extreme-H guard: if even the minimum tile exceeds the default budget, raise the
    # scoped limit (best effort) rather than failing tile selection.
    need = tile * per_row + (4 << 20)
    if need > vmem_limit:
        vmem_limit = min(need, max(vmem_limit, cap - (4 << 20)))
    return int(tile), int(vmem_limit)


def layer_norm_pallas(x, weight, bias, eps: float = 1e-5, row_tile: int | None = None):
    """x: (..., H) -> LayerNorm over the last axis with affine weight/bias."""
    orig_shape = x.shape
    H = int(orig_shape[-1])
    x2 = x.reshape(-1, H)
    R = x2.shape[0]

    # Lane-dense packing for small H: pack g = 128 // H rows into the lane dim so DMAs
    # and stores use all 128 lanes (no masked vst.msk).  Gated so the wrapper reshape
    # stays a free row-major metadata reshape; otherwise fall back (still correct).
    g = 1
    if H < 128 and (128 % H == 0):
        gc = 128 // H
        if R % gc == 0:
            g = gc

    if g > 1:
        Rp, GH = R // g, g * H
        x2 = x2.reshape(Rp, GH)
        w2 = jnp.tile(weight.reshape(1, H), (1, g))
        b2 = jnp.tile(bias.reshape(1, H), (1, g))
    else:
        Rp, GH = R, H
        w2 = weight.reshape(1, H)
        b2 = bias.reshape(1, H)

    tile, vmem_limit = _tile_plan(Rp, GH, x2.dtype.itemsize, x2.dtype.itemsize)
    if row_tile is not None:
        tile = int(row_tile)

    kernel = functools.partial(_layernorm_kernel, eps=float(eps), h=H, g=g)
    grid = (pl.cdiv(Rp, tile),)   # no padding copy: Pallas masks the OOB tail block

    out = pl.pallas_call(
        kernel,
        out_shape=jax.ShapeDtypeStruct((Rp, GH), x.dtype),
        grid_spec=pltpu.PrefetchScalarGridSpec(
            num_scalar_prefetch=0,
            grid=grid,
            in_specs=[
                pl.BlockSpec((tile, GH), lambda i: (i, 0)),
                pl.BlockSpec((1, GH), lambda i: (0, 0)),
                pl.BlockSpec((1, GH), lambda i: (0, 0)),
            ],
            out_specs=pl.BlockSpec((tile, GH), lambda i: (i, 0)),
        ),
        compiler_params=pltpu.CompilerParams(
            dimension_semantics=("parallel",),
            vmem_limit_bytes=int(vmem_limit),
        ),
    )(x2, w2, b2)

    return out.reshape(orig_shape)


def _reference_layer_norm(x, weight, bias, eps):
    xf = x.astype(jnp.float32)
    mean = jnp.mean(xf, axis=-1, keepdims=True)
    var = jnp.mean((xf - mean) ** 2, axis=-1, keepdims=True)
    y = (xf - mean) * jax.lax.rsqrt(var + eps) * weight.astype(jnp.float32) \
        + bias.astype(jnp.float32)
    return y.astype(x.dtype)


if __name__ == "__main__":
    key = jax.random.PRNGKey(0)
    k1, k2, k3, k4, k5, k6 = jax.random.split(key, 6)

    def check(x, w, b, eps, atol, rtol, name):
        y = jax.block_until_ready(layer_norm_pallas(x, w, b, eps=eps))
        ref = _reference_layer_norm(x, w, b, eps)
        assert y.shape == x.shape, f"shape mismatch ({name})"
        assert jnp.allclose(y, ref, atol=atol, rtol=rtol), f"mismatch vs reference ({name})"

    # Case 1: lane-dense H (multiple of 128), module-default affine params (ones/zeros).
    x1 = jax.random.normal(k1, (2, 8, 128), dtype=jnp.float32)
    check(x1, jnp.ones((128,), jnp.float32), jnp.zeros((128,), jnp.float32),
          1e-5, 1e-4, 1e-4, "case1")

    # Case 2: small H with rows % (128 // H) == 0 -> lane-dense packed path (g = 4).
    x2 = jax.random.normal(k2, (2, 8, 32), dtype=jnp.float32)
    w_s = 1.0 + 0.1 * jax.random.normal(k3, (32,), dtype=jnp.float32)
    b_s = 0.1 * jax.random.normal(k4, (32,), dtype=jnp.float32)
    check(x2, w_s, b_s, 1e-5, 1e-4, 1e-4, "case2-packed")

    # Case 3: ragged rows (R = 15 not divisible by g) -> unpacked fallback, masked tail.
    x3 = jax.random.normal(k5, (3, 5, 32), dtype=jnp.float32)
    check(x3, w_s, b_s, 1e-5, 1e-4, 1e-4, "case3-ragged")

    # Case 4: bf16 activations (sublane packing multiple = 16).
    x4 = jax.random.normal(k6, (2, 8, 256), dtype=jnp.bfloat16)
    check(x4, jnp.ones((256,), jnp.float32), jnp.zeros((256,), jnp.float32),
          1e-5, 5e-2, 5e-2, "case4-bf16")

    print("KERNEL_OK")
</pallas_src>

<mosaic_0001>
module attributes {stable_mosaic.version = 11 : i64} {
  func.func @_layernorm_kernel(%arg0: i32, %arg1: memref<16x128xf32, #tpu.memory_space<vmem>>, %arg2: memref<1x128xf32, #tpu.memory_space<vmem>>, %arg3: memref<1x128xf32, #tpu.memory_space<vmem>>, %arg4: memref<16x128xf32, #tpu.memory_space<vmem>>) attributes {dimension_semantics = [#tpu.dimension_semantics<parallel>], iteration_bounds = array<i64: 1>, scalar_prefetch = 0 : i64, scratch_operands = 0 : i64, tpu.core_type = #tpu.core_type<tc>, window_params = [{transform_indices = @transform_0, window_bounds = array<i64: 16, 128>}, {pipeline_mode = #tpu.pipeline_mode<synchronous>, transform_indices = @transform_1, window_bounds = array<i64: 1, 128>}, {pipeline_mode = #tpu.pipeline_mode<synchronous>, transform_indices = @transform_2, window_bounds = array<i64: 1, 128>}, {transform_indices = @transform_3, window_bounds = array<i64: 16, 128>}]} {
    %c0 = arith.constant 0 : index
    %c0_0 = arith.constant 0 : index
    %0 = vector.load %arg1[%c0, %c0_0] : memref<16x128xf32, #tpu.memory_space<vmem>>, vector<16x128xf32>
    %cst = arith.constant dense<0.000000e+00> : vector<16xf32>
    %1 = vector.multi_reduction <add>, %0, %cst [1] : vector<16x128xf32> to vector<16xf32>
    %2 = vector.shape_cast %1 : vector<16xf32> to vector<16x1xf32>
    %3 = arith.mulf %0, %0 : vector<16x128xf32>
    %cst_1 = arith.constant dense<0.000000e+00> : vector<16xf32>
    %4 = vector.multi_reduction <add>, %3, %cst_1 [1] : vector<16x128xf32> to vector<16xf32>
    %5 = vector.shape_cast %4 : vector<16xf32> to vector<16x1xf32>
    %cst_2 = arith.constant 7.812500e-03 : f32
    %6 = vector.broadcast %cst_2 : f32 to vector<16x1xf32>
    %7 = arith.mulf %2, %6 : vector<16x1xf32>
    %cst_3 = arith.constant 7.812500e-03 : f32
    %8 = vector.broadcast %cst_3 : f32 to vector<16x1xf32>
    %9 = arith.mulf %5, %8 : vector<16x1xf32>
    %10 = arith.mulf %7, %7 : vector<16x1xf32>
    %11 = arith.subf %9, %10 : vector<16x1xf32>
    %cst_4 = arith.constant 0.000000e+00 : f32
    %12 = vector.broadcast %cst_4 : f32 to vector<16x1xf32>
    %13 = arith.maximumf %11, %12 : vector<16x1xf32>
    %cst_5 = arith.constant 9.99999974E-6 : f32
    %14 = vector.broadcast %cst_5 : f32 to vector<16x1xf32>
    %15 = arith.addf %13, %14 : vector<16x1xf32>
    %16 = math.rsqrt %15 : vector<16x1xf32>
    %c0_6 = arith.constant 0 : index
    %c0_7 = arith.constant 0 : index
    %17 = vector.load %arg2[%c0_6, %c0_7] : memref<1x128xf32, #tpu.memory_space<vmem>>, vector<1x128xf32>
    %c0_8 = arith.constant 0 : index
    %c0_9 = arith.constant 0 : index
    %18 = vector.load %arg3[%c0_8, %c0_9] : memref<1x128xf32, #tpu.memory_space<vmem>>, vector<1x128xf32>
    %19 = vector.broadcast %7 : vector<16x1xf32> to vector<16x128xf32>
    %20 = arith.subf %0, %19 : vector<16x128xf32>
    %21 = vector.broadcast %16 : vector<16x1xf32> to vector<16x128xf32>
    %22 = arith.mulf %20, %21 : vector<16x128xf32>
    %23 = vector.broadcast %17 : vector<1x128xf32> to vector<16x128xf32>
    %24 = arith.mulf %22, %23 : vector<16x128xf32>
    %25 = vector.broadcast %18 : vector<1x128xf32> to vector<16x128xf32>
    %26 = arith.addf %24, %25 : vector<16x128xf32>
    %c0_10 = arith.constant 0 : index
    %c0_11 = arith.constant 0 : index
    %27 = vector.load %arg4[%c0_10, %c0_11] : memref<16x128xf32, #tpu.memory_space<vmem>>, vector<16x128xf32>
    tpu.vector_store %arg4[%c0_10, %c0_11], %26 {strides = array<i32>} : memref<16x128xf32, #tpu.memory_space<vmem>>, vector<16x128xf32>,
    return
  }
  func.func @transform_0(%arg0: i32) -> (i32, i32) {
    %c0_i32 = arith.constant 0 : i32
    %c0_i32_0 = arith.constant 0 : i32
    return %arg0, %c0_i32 : i32, i32
  }
  func.func @transform_1(%arg0: i32) -> (i32, i32) {
    %c0_i32 = arith.constant 0 : i32
    %c0_i32_0 = arith.constant 0 : i32
    %c0_i32_1 = arith.constant 0 : i32
    return %c0_i32, %c0_i32_0 : i32, i32
  }
  func.func @transform_2(%arg0: i32) -> (i32, i32) {
    %c0_i32 = arith.constant 0 : i32
    %c0_i32_0 = arith.constant 0 : i32
    %c0_i32_1 = arith.constant 0 : i32
    return %c0_i32, %c0_i32_0 : i32, i32
  }
  func.func @transform_3(%arg0: i32) -> (i32, i32) {
    %c0_i32 = arith.constant 0 : i32
    %c0_i32_0 = arith.constant 0 : i32
    return %arg0, %c0_i32 : i32, i32
  }
}

</mosaic_0001>

<llo_original>
// kernel: tpu_custom_call.1
$region0: #{tpu_custom_call.1}
  #allocation0 [shape = 'u32[]', space=smem, size = 0x4, offset = 0x4, fixed_abs, tag = 'smem constant byte address 0x4 - core index']
  #allocation1 [shape = 'u32[72,128]{1,0:T(1,128)}', space=vmem, size = 0x9000, scoped, tag = 'internal scratch']
  %s0 = inlined_call_operand.hbm [shape: f32[16,128], index: 0, kind: input, shape index: {}]
  %s1 = inlined_call_operand.hbm [shape: f32[1,128], index: 1, kind: input, shape index: {}]
  %s2 = inlined_call_operand.vmem [shape: f32[1,128], index: 2, kind: input, shape index: {}]
  %s3 = inlined_call_operand.hbm [shape: f32[16,128], index: 3, kind: output, shape index: {}]
  %s4 = sld [smem:[#allocation0]]
  $region30: #{tpu_custom_call.1} parent=0
    _
  %s6 = ssub.s32 1, %s4
  %s7 = scalar_select 0, %s6, %s4
  $region1: #{tpu_custom_call.1} parent=0
    #allocation2 [shape = 'u8[8192]{0}', space=vmem, size = 0x2000, scoped, tag = 'input window, operand 0, single buffered']
    #allocation3 [shape = 's32[1]{0}', space=sflag, size = 0x4, scoped, tag = 'scoped memory for tpu_custom_call.1']
    #allocation4 [shape = 's32[1]{0}', space=sflag, size = 0x4, scoped, tag = 'scoped memory for tpu_custom_call.1']
    #allocation5 [shape = 'u8[512]{0}', space=vmem, size = 0x400, scoped, tag = 'input window, operand 1, single buffered']
    #allocation6 [shape = 's32[1]{0}', space=sflag, size = 0x4, scoped, tag = 'scoped memory for tpu_custom_call.1']
    #allocation7 [shape = 'u8[8192]{0}', space=vmem, size = 0x2000, scoped, tag = 'output window, operand 0, single buffered']
    %8 = vsyncpa [#allocation3], 0
    %9 = vsyncpa [#allocation6], 0
    %10 = vsyncpa [#allocation4], 0
    // Predicated region
    $region2: #{tpu_custom_call.1} parent=1 // pred_check
      _
    $region3: #{tpu_custom_call.1} parent=1 // pred_check_branch
      %12 = sbr.rel (0) target = $region5
    $region4: #{tpu_custom_call.1} parent=1 // pred_region
      %14 = vsyncadd [#allocation3], 0
      %s15 = sshll.u32 %s0, 4
      %s16 = int_to_ptr.hbm [resolvable:$true] %s15
      %s17 = sshll.u32 [#allocation2], 4
      %s18 = int_to_ptr.vmem [resolvable:$true] %s17
      %23 = dma.hbm_to_vmem [thread:$0]  %s16, 256, %s18, [#allocation3], 128, 128, 8
    $region5: #{tpu_custom_call.1} parent=1 // pred_fallthru
      _
    // Predicated region
    $region6: #{tpu_custom_call.1} parent=1 // pred_check
      _
    $region7: #{tpu_custom_call.1} parent=1 // pred_check_branch
      %25 = sbr.rel (0) target = $region9
    $region8: #{tpu_custom_call.1} parent=1 // pred_region
      %27 = vsyncadd [#allocation6], 0
      %s29 = sshll.u32 %s1, 4
      %s30 = int_to_ptr.hbm [resolvable:$true] %s29
      %s31 = sshll.u32 [#allocation5], 4
      %s32 = int_to_ptr.vmem [resolvable:$true] %s31
      %34 = dma.hbm_to_vmem [thread:$0]  %s30, 16, %s32, [#allocation6]
    $region9: #{tpu_custom_call.1} parent=1 // pred_fallthru
      _
    // Predicated region
    $region10: #{tpu_custom_call.1} parent=1 // pred_check
      _
    $region11: #{tpu_custom_call.1} parent=1 // pred_check_branch
      %36 = sbr.rel (0) target = $region13
    $region12: #{tpu_custom_call.1} parent=1 // pred_region
      _
    $region13: #{tpu_custom_call.1} parent=1 // pred_fallthru
      _
    // Predicated region
    $region14: #{tpu_custom_call.1} parent=1 // pred_check
      _
    $region15: #{tpu_custom_call.1} parent=1 // pred_check_branch
      %38 = sbr.rel (0) target = $region17
    $region16: #{tpu_custom_call.1} parent=1 // pred_region
      %40 = dma.done [#allocation3], 256
    $region17: #{tpu_custom_call.1} parent=1 // pred_fallthru
      _
    // Predicated region
    $region18: #{tpu_custom_call.1} parent=1 // pred_check
      _
    $region19: #{tpu_custom_call.1} parent=1 // pred_check_branch
      %42 = sbr.rel (0) target = $region21
    $region20: #{tpu_custom_call.1} parent=1 // pred_region
      %44 = dma.done [#allocation6], 16
    $region21: #{tpu_custom_call.1} parent=1 // pred_fallthru
      _
    %v45 = vld [vmem:[#allocation2] sm:$0xff]
    %v46 = vld [vmem:[#allocation2 + $0x8] sm:$0xff]
    %47 = vadd.xlane.f32.xlu0 %v45
    %v48 = vpop.xlane.xlu0 %47
    %49 = vadd.xlane.f32.xlu0 %v46
    %v50 = vpop.xlane.xlu0 %49
    %v51 = vmul.f32 %v45, %v45
    %v52 = vmul.f32 %v46, %v46
    %53 = vadd.xlane.f32.xlu0 %v51
    %v54 = vpop.xlane.xlu0 %53
    %55 = vadd.xlane.f32.xlu0 %v52
    %v56 = vpop.xlane.xlu0 %55
    %v57 = vmul.f32 %v48, 0.0078125
    %v58 = vmul.f32 %v50, 0.0078125
    %v59 = vmul.f32 %v54, 0.0078125
    %v60 = vmul.f32 %v56, 0.0078125
    %v61 = vmul.f32 %v57, %v57
    %v62 = vmul.f32 %v58, %v58
    %v63 = vsub.f32 %v59, %v61
    %v64 = vsub.f32 %v60, %v62
    %v65 = vmax.f32 %v63, 0.0
    %v66 = vmax.f32 %v64, 0.0
    %v67 = vadd.f32 %v65, 1e-05
    %v68 = vadd.f32 %v66, 1e-05
    %v69 = vrsqrt.pop %v67
    %v70 = vmul.f32 %v69, %v67
    %v71 = vmul.f32 %v70, %v69
    %v72 = vmul.f32 0.5, %v71
    %v73 = vsub.f32 1.5, %v72
    %v74 = vmul.f32 %v69, %v73
    %vm75 = vweird.f32 %v67
    %vm76 = vweird.f32 %v69
    %vm77 = vmor %vm75, %vm76
    %v78 = vsel %vm77, %v69, %v74
    %v79 = vrsqrt.pop %v68
    %v80 = vmul.f32 %v79, %v68
    %v81 = vmul.f32 %v80, %v79
    %v82 = vmul.f32 0.5, %v81
    %v83 = vsub.f32 1.5, %v82
    %v84 = vmul.f32 %v79, %v83
    %vm85 = vweird.f32 %v68
    %vm86 = vweird.f32 %v79
    %vm87 = vmor %vm85, %vm86
    %v88 = vsel %vm87, %v79, %v84
    %v89 = vld [vmem:[#allocation5] sm:$0x1]
    %v90 = vld [vmem:[%s2] sm:$0x1]
    %v91 = vsub.f32 %v45, %v57
    %v92 = vsub.f32 %v46, %v58
    %v93 = vmul.f32 %v91, %v78
    %v94 = vmul.f32 %v92, %v88
    %v96 = vperm.slane %v89, 0
    %v98 = vmul.f32 %v93, %v96
    %v99 = vmul.f32 %v94, %v96
    %v101 = vperm.slane %v90, 0
    %v103 = vadd.f32 %v98, %v101
    %v104 = vadd.f32 %v99, %v101
    %105 = vst [vmem:[#allocation7] sm:$0xff] %v103
    %106 = vst [vmem:[#allocation7 + $0x8] sm:$0xff] %v104
    // Predicated region
    $region22: #{tpu_custom_call.1} parent=1 // pred_check
      _
    $region23: #{tpu_custom_call.1} parent=1 // pred_check_branch
      %108 = sbr.rel (0) target = $region25
    $region24: #{tpu_custom_call.1} parent=1 // pred_region
      %110 = vsyncadd [#allocation4], 0
      %s111 = sshll.u32 [#allocation7], 4
      %s112 = int_to_ptr.vmem [resolvable:$true] %s111
      %s113 = sshll.u32 %s3, 4
      %s114 = int_to_ptr.hbm [resolvable:$true] %s113
      %119 = dma.vmem_to_hbm [thread:$0]  %s112, 256, %s114, [#allocation4], 128, 128, 8
    $region25: #{tpu_custom_call.1} parent=1 // pred_fallthru
      _
    // Predicated region
    $region26: #{tpu_custom_call.1} parent=1 // pred_check
      _
    $region27: #{tpu_custom_call.1} parent=1 // pred_check_branch
      %121 = sbr.rel (0) target = $region29
    $region28: #{tpu_custom_call.1} parent=1 // pred_region
      %123 = dma.done [#allocation4], 256
    $region29: #{tpu_custom_call.1} parent=1 // pred_fallthru
      _
    %124 = vsyncpa [#allocation3], 1
    %125 = vsyncpa [#allocation6], 1
    %126 = vsyncpa [#allocation4], 1

</llo_original>
